<compile_context>
chip_gen: v7x
topology: tpu7x:2x2x1
jax: 0.10.0
libtpu: 0.0.40
codegen_flags: <defaults>
</compile_context>

<pallas_src>
import jax
import jax.numpy as jnp
from jax.experimental import pallas as pl
from jax.experimental.pallas import tpu as pltpu


def _round_up(x: int, m: int) -> int:
    return ((x + m - 1) // m) * m


def _make_logitnorm_kernel(t: float):
    def kernel(x_ref, tgt_ref, rmask_ref, w_ref, part_ref):
        x = x_ref[...].astype(jnp.float32)            # (TN, C)
        tgt = tgt_ref[...]                            # (TN, 1) int32
        rmask = rmask_ref[...].astype(jnp.float32)    # (TN, 1): 1 valid, 0 pad
        w = w_ref[...].astype(jnp.float32)            # (1, C)
        tn, c = x.shape

        # --- logit normalization: z = x / ((||x||_2 + 1e-7) * t) ------------
        sq = jnp.sum(x * x, axis=1, keepdims=True)                  # (TN, 1)
        norm = jnp.sqrt(sq) + jnp.float32(1e-7)
        z = x * pl.reciprocal(norm * jnp.float32(t), approx=True)   # EUP recip

        # --- softmax over classes -> output_prob -----------------------------
        z_max = jnp.max(z, axis=1, keepdims=True)
        e = jnp.exp(z - z_max)
        p = e * pl.reciprocal(jnp.sum(e, axis=1, keepdims=True), approx=True)

        # --- cross_entropy treats p as logits: log_softmax(p) ----------------
        # p in [0, 1] so exp(p) <= e — the usual max-subtraction is redundant.
        lse = jnp.log(jnp.sum(jnp.exp(p), axis=1, keepdims=True))   # (TN, 1)
        logp = p - lse                                              # (TN, C)

        # --- fused weighted one-hot gather (rows masked for N padding) -------
        iota = jax.lax.broadcasted_iota(jnp.int32, (tn, c), 1)
        wo = jnp.where(iota == tgt, w, jnp.float32(0.0))            # (TN, C)
        num_rows = jnp.sum(wo * logp, axis=1, keepdims=True) * rmask
        den_rows = jnp.sum(wo, axis=1, keepdims=True) * rmask
        num = -jnp.sum(num_rows)                                    # scalar
        den = jnp.sum(den_rows)                                     # scalar

        # --- lane-dense partial output: [0,0] = num, [0,1] = den, rest 0 -----
        sub = jax.lax.broadcasted_iota(jnp.int32, (8, 128), 0)
        lane = jax.lax.broadcasted_iota(jnp.int32, (8, 128), 1)
        part_ref[...] = jnp.where(
            (sub == 0) & (lane == 0), num,
            jnp.where((sub == 0) & (lane == 1), den, jnp.float32(0.0)))

    return kernel


def logitnorm_loss(output, target, weight, t: float = 1.0, tile_n: int = 512):
    """output: (N, C) float, target: (N,) int, weight: (C,) float -> scalar f32."""
    n, c = output.shape

    # Tile rows: multiple of 8 (sublane), capped so 4 buffered (TN, C) tiles
    # stay far below the 32 MiB scoped-VMEM budget (safe on v5e/v6e/v7x).
    tn = min(tile_n, _round_up(n, 8))
    n_pad = _round_up(n, tn)
    num_tiles = n_pad // tn

    tgt = target.astype(jnp.int32)
    if n_pad != n:
        x = jnp.pad(output, ((0, n_pad - n), (0, 0)))   # zero rows: finite math
        tgt = jnp.pad(tgt, (0, n_pad - n))              # masked out via rmask
    else:
        x = output
    tgt2d = tgt.reshape(n_pad, 1)
    rmask = (jnp.arange(n_pad) < n).astype(jnp.float32).reshape(n_pad, 1)
    w2d = weight.astype(jnp.float32).reshape(1, c)

    parts = pl.pallas_call(
        _make_logitnorm_kernel(t),
        out_shape=jax.ShapeDtypeStruct((num_tiles * 8, 128), jnp.float32),
        grid=(num_tiles,),
        in_specs=[
            pl.BlockSpec((tn, c), lambda i: (i, 0)),
            pl.BlockSpec((tn, 1), lambda i: (i, 0)),
            pl.BlockSpec((tn, 1), lambda i: (i, 0)),
            pl.BlockSpec((1, c), lambda i: (0, 0)),     # weight stays resident
        ],
        out_specs=pl.BlockSpec((8, 128), lambda i: (i, 0)),
        compiler_params=pltpu.CompilerParams(
            dimension_semantics=("parallel",),          # independent tiles -> megacore
            vmem_limit_bytes=32 * 1024 * 1024,
        ),
    )(x, tgt2d, rmask, w2d)

    # Finalize the weighted mean from the per-tile partials in the wrapper.
    num = jnp.sum(parts[:, 0])
    den = jnp.sum(parts[:, 1])
    return num / den


def _reference(output, target, weight, t=1.0):
    x = output.astype(jnp.float32)
    norm = jnp.sqrt(jnp.sum(x * x, axis=1, keepdims=True)) + 1e-7
    p = jax.nn.softmax(x / (norm * t), axis=1)
    logp = jax.nn.log_softmax(p, axis=1)
    picked_logp = jnp.take_along_axis(logp, target[:, None], axis=1)[:, 0]
    picked_w = weight[target]
    return -jnp.sum(picked_w * picked_logp) / jnp.sum(picked_w)


if __name__ == "__main__":
    key = jax.random.PRNGKey(0)
    k1, k2 = jax.random.split(key)

    N, C = 8, 32
    output = jax.random.normal(k1, (N, C), dtype=jnp.float32) * 3.0
    target = jax.random.randint(k2, (N,), 0, C, dtype=jnp.int32)
    # Deterministic class weights (module __init__ takes `weight` of shape (C,)).
    weight = 0.5 + jnp.arange(C, dtype=jnp.float32) / C
    t = 1.0

    loss = logitnorm_loss(output, target, weight, t)
    loss = jax.block_until_ready(loss)

    ref = _reference(output, target, weight, t)
    # Tolerance relaxed vs v1: approx (EUP) reciprocals perturb low-order bits
    # relative to the exact-division reference.
    assert jnp.allclose(loss, ref, rtol=5e-3, atol=5e-3), (loss, ref)
    print("KERNEL_OK")
</pallas_src>

<mosaic_0001>
module attributes {stable_mosaic.version = 11 : i64} {
  func.func @kernel(%arg0: i32, %arg1: memref<8x32xf32, #tpu.memory_space<vmem>>, %arg2: memref<8x1xi32, #tpu.memory_space<vmem>>, %arg3: memref<8x1xf32, #tpu.memory_space<vmem>>, %arg4: memref<1x32xf32, #tpu.memory_space<vmem>>, %arg5: memref<8x128xf32, #tpu.memory_space<vmem>>) attributes {dimension_semantics = [#tpu.dimension_semantics<parallel>], iteration_bounds = array<i64: 1>, scalar_prefetch = 0 : i64, scratch_operands = 0 : i64, tpu.core_type = #tpu.core_type<tc>, window_params = [{transform_indices = @transform_0, window_bounds = array<i64: 8, 32>}, {transform_indices = @transform_1, window_bounds = array<i64: 8, 1>}, {transform_indices = @transform_2, window_bounds = array<i64: 8, 1>}, {pipeline_mode = #tpu.pipeline_mode<synchronous>, transform_indices = @transform_3, window_bounds = array<i64: 1, 32>}, {transform_indices = @transform_4, window_bounds = array<i64: 8, 128>}]} {
    %c0 = arith.constant 0 : index
    %c0_0 = arith.constant 0 : index
    %0 = vector.load %arg1[%c0, %c0_0] : memref<8x32xf32, #tpu.memory_space<vmem>>, vector<8x32xf32>
    %c0_1 = arith.constant 0 : index
    %c0_2 = arith.constant 0 : index
    %1 = vector.load %arg2[%c0_1, %c0_2] : memref<8x1xi32, #tpu.memory_space<vmem>>, vector<8x1xi32>
    %c0_3 = arith.constant 0 : index
    %c0_4 = arith.constant 0 : index
    %2 = vector.load %arg3[%c0_3, %c0_4] : memref<8x1xf32, #tpu.memory_space<vmem>>, vector<8x1xf32>
    %c0_5 = arith.constant 0 : index
    %c0_6 = arith.constant 0 : index
    %3 = vector.load %arg4[%c0_5, %c0_6] : memref<1x32xf32, #tpu.memory_space<vmem>>, vector<1x32xf32>
    %4 = arith.mulf %0, %0 : vector<8x32xf32>
    %cst = arith.constant dense<0.000000e+00> : vector<8xf32>
    %5 = vector.multi_reduction <add>, %4, %cst [1] : vector<8x32xf32> to vector<8xf32>
    %6 = vector.shape_cast %5 : vector<8xf32> to vector<8x1xf32>
    %7 = math.sqrt %6 : vector<8x1xf32>
    %cst_7 = arith.constant 1.000000e-07 : f32
    %8 = vector.broadcast %cst_7 : f32 to vector<8x1xf32>
    %9 = arith.addf %7, %8 : vector<8x1xf32>
    %cst_8 = arith.constant 1.000000e+00 : f32
    %10 = vector.broadcast %cst_8 : f32 to vector<8x1xf32>
    %11 = arith.mulf %9, %10 : vector<8x1xf32>
    %12 = tpu.reciprocal %11 {approx = true} : vector<8x1xf32> -> vector<8x1xf32>
    %13 = vector.broadcast %12 : vector<8x1xf32> to vector<8x32xf32>
    %14 = arith.mulf %0, %13 : vector<8x32xf32>
    %cst_9 = arith.constant dense<0xFF800000> : vector<8xf32>
    %15 = vector.multi_reduction <maximumf>, %14, %cst_9 [1] : vector<8x32xf32> to vector<8xf32>
    %16 = vector.shape_cast %15 : vector<8xf32> to vector<8x1xf32>
    %17 = vector.broadcast %16 : vector<8x1xf32> to vector<8x32xf32>
    %18 = arith.subf %14, %17 : vector<8x32xf32>
    %19 = math.exp %18 : vector<8x32xf32>
    %cst_10 = arith.constant dense<0.000000e+00> : vector<8xf32>
    %20 = vector.multi_reduction <add>, %19, %cst_10 [1] : vector<8x32xf32> to vector<8xf32>
    %21 = vector.shape_cast %20 : vector<8xf32> to vector<8x1xf32>
    %22 = tpu.reciprocal %21 {approx = true} : vector<8x1xf32> -> vector<8x1xf32>
    %23 = vector.broadcast %22 : vector<8x1xf32> to vector<8x32xf32>
    %24 = arith.mulf %19, %23 : vector<8x32xf32>
    %25 = math.exp %24 : vector<8x32xf32>
    %cst_11 = arith.constant dense<0.000000e+00> : vector<8xf32>
    %26 = vector.multi_reduction <add>, %25, %cst_11 [1] : vector<8x32xf32> to vector<8xf32>
    %27 = vector.shape_cast %26 : vector<8xf32> to vector<8x1xf32>
    %28 = math.log %27 : vector<8x1xf32>
    %29 = vector.broadcast %28 : vector<8x1xf32> to vector<8x32xf32>
    %30 = arith.subf %24, %29 : vector<8x32xf32>
    %31 = tpu.iota {dimensions = array<i32: 1>} : vector<8x32xi32>
    %32 = vector.broadcast %1 : vector<8x1xi32> to vector<8x32xi32>
    %33 = arith.cmpi eq, %31, %32 : vector<8x32xi32>
    %cst_12 = arith.constant 0.000000e+00 : f32
    %34 = vector.shape_cast %3 : vector<1x32xf32> to vector<1x32xf32>
    %35 = vector.broadcast %34 : vector<1x32xf32> to vector<8x32xf32>
    %36 = vector.broadcast %cst_12 : f32 to vector<8x32xf32>
    %37 = arith.select %33, %35, %36 : vector<8x32xi1>, vector<8x32xf32>
    %38 = arith.mulf %37, %30 : vector<8x32xf32>
    %cst_13 = arith.constant dense<0.000000e+00> : vector<8xf32>
    %39 = vector.multi_reduction <add>, %38, %cst_13 [1] : vector<8x32xf32> to vector<8xf32>
    %40 = vector.shape_cast %39 : vector<8xf32> to vector<8x1xf32>
    %41 = arith.mulf %40, %2 : vector<8x1xf32>
    %cst_14 = arith.constant dense<0.000000e+00> : vector<8xf32>
    %42 = vector.multi_reduction <add>, %37, %cst_14 [1] : vector<8x32xf32> to vector<8xf32>
    %43 = vector.shape_cast %42 : vector<8xf32> to vector<8x1xf32>
    %44 = arith.mulf %43, %2 : vector<8x1xf32>
    %45 = vector.shape_cast %41 : vector<8x1xf32> to vector<1x8x1xf32>
    %cst_15 = arith.constant dense<0.000000e+00> : vector<1xf32>
    %46 = vector.multi_reduction <add>, %45, %cst_15 [1, 2] : vector<1x8x1xf32> to vector<1xf32>
    %47 = vector.shape_cast %46 : vector<1xf32> to vector<1x1x1xf32>
    %48 = vector.extract %47[0, 0, 0] : f32 from vector<1x1x1xf32>
    %cst_16 = arith.constant 0.000000e+00 : f32
    %49 = arith.subf %cst_16, %48 : f32
    %50 = vector.shape_cast %44 : vector<8x1xf32> to vector<1x8x1xf32>
    %cst_17 = arith.constant dense<0.000000e+00> : vector<1xf32>
    %51 = vector.multi_reduction <add>, %50, %cst_17 [1, 2] : vector<1x8x1xf32> to vector<1xf32>
    %52 = vector.shape_cast %51 : vector<1xf32> to vector<1x1x1xf32>
    %53 = vector.extract %52[0, 0, 0] : f32 from vector<1x1x1xf32>
    %54 = tpu.iota {dimensions = array<i32: 0>} : vector<8x128xi32>
    %55 = tpu.iota {dimensions = array<i32: 1>} : vector<8x128xi32>
    %c0_i32 = arith.constant 0 : i32
    %56 = vector.broadcast %c0_i32 : i32 to vector<8x128xi32>
    %57 = arith.cmpi eq, %54, %56 : vector<8x128xi32>
    %c0_i32_18 = arith.constant 0 : i32
    %58 = vector.broadcast %c0_i32_18 : i32 to vector<8x128xi32>
    %59 = arith.cmpi eq, %55, %58 : vector<8x128xi32>
    %60 = arith.andi %57, %59 : vector<8x128xi1>
    %c0_i32_19 = arith.constant 0 : i32
    %61 = vector.broadcast %c0_i32_19 : i32 to vector<8x128xi32>
    %62 = arith.cmpi eq, %54, %61 : vector<8x128xi32>
    %c1_i32 = arith.constant 1 : i32
    %63 = vector.broadcast %c1_i32 : i32 to vector<8x128xi32>
    %64 = arith.cmpi eq, %55, %63 : vector<8x128xi32>
    %65 = arith.andi %62, %64 : vector<8x128xi1>
    %cst_20 = arith.constant 0.000000e+00 : f32
    %66 = vector.broadcast %53 : f32 to vector<8x128xf32>
    %67 = vector.broadcast %cst_20 : f32 to vector<8x128xf32>
    %68 = arith.select %65, %66, %67 : vector<8x128xi1>, vector<8x128xf32>
    %69 = vector.broadcast %49 : f32 to vector<8x128xf32>
    %70 = arith.select %60, %69, %68 : vector<8x128xi1>, vector<8x128xf32>
    %c0_21 = arith.constant 0 : index
    %c0_22 = arith.constant 0 : index
    %71 = vector.load %arg5[%c0_21, %c0_22] : memref<8x128xf32, #tpu.memory_space<vmem>>, vector<8x128xf32>
    tpu.vector_store %arg5[%c0_21, %c0_22], %70 {strides = array<i32>} : memref<8x128xf32, #tpu.memory_space<vmem>>, vector<8x128xf32>,
    return
  }
  func.func @transform_0(%arg0: i32) -> (i32, i32) {
    %c0_i32 = arith.constant 0 : i32
    %c0_i32_0 = arith.constant 0 : i32
    return %arg0, %c0_i32 : i32, i32
  }
  func.func @transform_1(%arg0: i32) -> (i32, i32) {
    %c0_i32 = arith.constant 0 : i32
    %c0_i32_0 = arith.constant 0 : i32
    return %arg0, %c0_i32 : i32, i32
  }
  func.func @transform_2(%arg0: i32) -> (i32, i32) {
    %c0_i32 = arith.constant 0 : i32
    %c0_i32_0 = arith.constant 0 : i32
    return %arg0, %c0_i32 : i32, i32
  }
  func.func @transform_3(%arg0: i32) -> (i32, i32) {
    %c0_i32 = arith.constant 0 : i32
    %c0_i32_0 = arith.constant 0 : i32
    %c0_i32_1 = arith.constant 0 : i32
    return %c0_i32, %c0_i32_0 : i32, i32
  }
  func.func @transform_4(%arg0: i32) -> (i32, i32) {
    %c0_i32 = arith.constant 0 : i32
    %c0_i32_0 = arith.constant 0 : i32
    return %arg0, %c0_i32 : i32, i32
  }
}

</mosaic_0001>

<llo_original>
// kernel: tpu_custom_call.1
$region0: #{tpu_custom_call.1}
  #allocation0 [shape = 'u32[]', space=smem, size = 0x4, offset = 0x4, fixed_abs, tag = 'smem constant byte address 0x4 - core index']
  #allocation1 [shape = 'u32[144,128]{1,0:T(1,128)}', space=vmem, size = 0x12000, scoped, tag = 'internal scratch']
  %s0 = inlined_call_operand.vmem [shape: f32[8,32], index: 0, kind: input, shape index: {}]
  %s1 = inlined_call_operand.vmem [shape: s32[8,1], index: 1, kind: input, shape index: {}]
  %s2 = inlined_call_operand.vmem [shape: f32[8,1], index: 2, kind: input, shape index: {}]
  %s3 = inlined_call_operand.vmem [shape: f32[1,32], index: 3, kind: input, shape index: {}]
  %s4 = inlined_call_operand.hbm [shape: f32[8,128], index: 4, kind: output, shape index: {}]
  %s5 = sld [smem:[#allocation0]]
  $region26: #{tpu_custom_call.1} parent=0
    _
  %s7 = ssub.s32 1, %s5
  %s8 = scalar_select 0, %s7, %s5
  $region1: #{tpu_custom_call.1} parent=0
    #allocation2 [shape = 'u8[4096]{0}', space=vmem, size = 0x1000, scoped, tag = 'output window, operand 0, single buffered']
    #allocation3 [shape = 's32[1]{0}', space=sflag, size = 0x4, scoped, tag = 'scoped memory for tpu_custom_call.1']
    %9 = vsyncpa [#allocation3], 0
    // Predicated region
    $region2: #{tpu_custom_call.1} parent=1 // pred_check
      _
    $region3: #{tpu_custom_call.1} parent=1 // pred_check_branch
      %11 = sbr.rel (0) target = $region5
    $region4: #{tpu_custom_call.1} parent=1 // pred_region
      _
    $region5: #{tpu_custom_call.1} parent=1 // pred_fallthru
      _
    // Predicated region
    $region6: #{tpu_custom_call.1} parent=1 // pred_check
      _
    $region7: #{tpu_custom_call.1} parent=1 // pred_check_branch
      %13 = sbr.rel (0) target = $region9
    $region8: #{tpu_custom_call.1} parent=1 // pred_region
      _
    $region9: #{tpu_custom_call.1} parent=1 // pred_fallthru
      _
    // Predicated region
    $region10: #{tpu_custom_call.1} parent=1 // pred_check
      _
    $region11: #{tpu_custom_call.1} parent=1 // pred_check_branch
      %15 = sbr.rel (0) target = $region13
    $region12: #{tpu_custom_call.1} parent=1 // pred_region
      _
    $region13: #{tpu_custom_call.1} parent=1 // pred_fallthru
      _
    // Predicated region
    $region14: #{tpu_custom_call.1} parent=1 // pred_check
      _
    $region15: #{tpu_custom_call.1} parent=1 // pred_check_branch
      %17 = sbr.rel (0) target = $region17
    $region16: #{tpu_custom_call.1} parent=1 // pred_region
      _
    $region17: #{tpu_custom_call.1} parent=1 // pred_fallthru
      _
    %v18 = vld [vmem:[%s0] sm:$0xff]
    %v19 = vld [vmem:[%s1] sm:$0xff]
    %v20 = vld [vmem:[%s2] sm:$0xff]
    %v21 = vld [vmem:[%s3] sm:$0x1]
    %v22 = vmul.f32 %v18, %v18
    %vm23 = vcmask 261120
    %v24 = vsel %vm23, %v22, 0.0
    %25 = vadd.xlane.f32.xlu0 %v24
    %v26 = vpop.xlane.xlu0 %25
    %v27 = vrsqrt.pop %v26
    %v28 = vmul.f32 %v26, %v27
    %vm29 = vcmp.eq.f32.partialorder %v26, inf
    %v30 = vsel %vm29, %v26, %v28
    %vm31 = vcmp.eq.f32.partialorder %v26, 0.0
    %v32 = vand.u32 %v26, 2147483648
    %v33 = vsel %vm31, %v32, %v30
    %v34 = vadd.f32 %v33, 1e-07
    %v35 = vrcp.pop %v34
    %v36 = vmul.f32 %v18, %v35
    %v37 = vsel %vm23, %v36, -inf
    %38 = vmax.xlane.f32.xlu0 %v37
    %v39 = vpop.xlane.xlu0 %38
    %v40 = vsub.f32 %v36, %v39
    %v41 = vmul.f32 %v40, 1.442695
    %v42 = vpow.pop %v41
    %v43 = vsel %vm23, %v42, 0.0
    %44 = vadd.xlane.f32.xlu0 %v43
    %v45 = vpop.xlane.xlu0 %44
    %v46 = vrcp.pop %v45
    %v47 = vmul.f32 %v42, %v46
    %v48 = vmul.f32 %v47, 1.442695
    %v49 = vpow.pop %v48
    %v50 = vsel %vm23, %v49, 0.0
    %51 = vadd.xlane.f32.xlu0 %v50
    %v52 = vpop.xlane.xlu0 %51
    %v53 = vlog2.pop %v52
    %v54 = vmul.f32 %v53, 0.6931472
    %v55 = vsub.f32 %v47, %v54
    %v56 = vlaneseq
    %v57 = vand.u32 %v56, 127
    %58 = vset.pattern.permute.xlu0 0
    %59 = vperm.xlu0 %58, %v19
    %v60 = vpop.permute.xlu0 %59
    %vm61 = vcmp.eq.s32.totalorder %v57, %v60
    %v63 = vlaneseq
    %v64 = vshrl.u32 %v63, 7
    %v65 = vsub.s32 0, %v64
    %v66 = vrot.slane %v21, %v65
    %v68 = vsel %vm61, %v66, 0.0
    %v69 = vmul.f32 %v68, %v55
    %v70 = vsel %vm23, %v69, 0.0
    %71 = vadd.xlane.f32.xlu0 %v70
    %v72 = vpop.xlane.xlu0 %71
    %v73 = vmul.f32 %v72, %v20
    %v74 = vsel %vm23, %v68, 0.0
    %75 = vadd.xlane.f32.xlu0 %v74
    %v76 = vpop.xlane.xlu0 %75
    %v77 = vmul.f32 %v76, %v20
    %vm78 = vcmask 7168
    %v79 = vsel %vm78, %v73, 0.0
    %80 = vadd.xlane.f32.xlu0 %v79
    %v81 = vpop.xlane.xlu0 %80
    %v82 = vrot.slane %v81, 4
    %v83 = vadd.f32 %v81, %v82
    %v84 = vrot.slane %v83, 2
    %v85 = vadd.f32 %v83, %v84
    %v86 = vrot.slane %v85, 1
    %v87 = vadd.f32 %v85, %v86
    %s88 = vtos %v87
    %s89 = ssub.f32 0.0, %s88
    %v90 = vsel %vm78, %v77, 0.0
    %91 = vadd.xlane.f32.xlu0 %v90
    %v92 = vpop.xlane.xlu0 %91
    %v93 = vrot.slane %v92, 4
    %v94 = vadd.f32 %v92, %v93
    %v95 = vrot.slane %v94, 2
    %v96 = vadd.f32 %v94, %v95
    %v97 = vrot.slane %v96, 1
    %v98 = vadd.f32 %v96, %v97
    %s99 = vtos %v98
    %v100 = vlaneseq
    %v101 = vshrl.u32 %v100, 7
    %vm102 = vcmp.eq.s32.totalorder %v101, 0
    %vm103 = vcmp.eq.s32.totalorder %v57, 0
    %vm104 = vmand %vm102, %vm103
    %vm105 = vcmp.eq.s32.totalorder %v57, 1
    %vm106 = vmand %vm102, %vm105
    %v107 = vstv %s99
    %v108 = vsel %vm106, %v107, 0.0
    %v109 = vstv %s89
    %v110 = vsel %vm104, %v109, %v108
    %111 = vst [vmem:[#allocation2] sm:$0xff] %v110
    // Predicated region
    $region18: #{tpu_custom_call.1} parent=1 // pred_check
      _
    $region19: #{tpu_custom_call.1} parent=1 // pred_check_branch
      %113 = sbr.rel (0) target = $region21
    $region20: #{tpu_custom_call.1} parent=1 // pred_region
      %s115 = ssub.s32 128, 128
      %116 = vsyncadd [#allocation3], %s115
      %s118 = sshll.u32 [#allocation2], 4
      %s119 = int_to_ptr.vmem [resolvable:$true] %s118
      %121 = dma.vmem_to_hbm [thread:$0]  %s119, 128, %s4, [#allocation3]
    $region21: #{tpu_custom_call.1} parent=1 // pred_fallthru
      _
    // Predicated region
    $region22: #{tpu_custom_call.1} parent=1 // pred_check
      _
    $region23: #{tpu_custom_call.1} parent=1 // pred_check_branch
      %123 = sbr.rel (0) target = $region25
    $region24: #{tpu_custom_call.1} parent=1 // pred_region
      %124 = dma.done [#allocation3], 128
    $region25: #{tpu_custom_call.1} parent=1 // pred_fallthru
      _
    %125 = vsyncpa [#allocation3], 1

</llo_original>
